<compile_context>
chip_gen: v7x
topology: tpu7x:2x2x1
jax: 0.10.0
libtpu: 0.0.40
codegen_flags: <defaults>
</compile_context>

<pallas_src>
import functools

import jax
import jax.numpy as jnp
from jax.experimental import pallas as pl
from jax.experimental.pallas import tpu as pltpu


def _patch_embed_kernel(patches_ref, w_ref, pos_ref, out_ref):
    # patches_ref: (N+1, K) bf16  one batch element's patches (row 0 is zeros)
    # w_ref:       (K, E)   bf16  projection weight (reshaped conv weight)
    # pos_ref:     (N+1, E) f32   row 0: cls_token + pos_embed[:,0]
    #                             rows 1..N: pos_embed[:,1:] + conv bias
    # out_ref:     (N+1, E)
    acc = jnp.dot(patches_ref[...], w_ref[...],
                  preferred_element_type=jnp.float32)          # MXU, f32 acc
    out_ref[...] = (acc + pos_ref[...]).astype(out_ref.dtype)  # single aligned store


@functools.partial(jax.jit, static_argnames=("patch_size",))
def patch_embedding_forward(x, conv_w, conv_b, cls_token, pos_embed, *, patch_size):
    """Forward pass of PatchEmbedding (eval mode).

    x:         (B, C, H, W)  NCHW
    conv_w:    (E, C, P, P)
    conv_b:    (E,)
    cls_token: (1, 1, E)
    pos_embed: (1, N + 1, E)
    returns:   (B, N + 1, E)
    """
    B, C, H, W = x.shape
    E = conv_w.shape[0]
    P = patch_size
    Hp, Wp = H // P, W // P
    N = Hp * Wp
    K = C * P * P

    # --- glue (allowed to fuse into the pallas input DMA): extract
    # non-overlapping patches in PyTorch conv+flatten order, cast to bf16, and
    # prepend a zero "patch" row standing in for the cls token position.
    patches = x.reshape(B, C, Hp, P, Wp, P)
    patches = patches.transpose(0, 2, 4, 1, 3, 5).reshape(B, N, K)
    patches = patches.astype(jnp.bfloat16)
    patches = jnp.pad(patches, ((0, 0), (1, 0), (0, 0)))        # (B, N+1, K)

    # Conv weight (E, C, P, P) -> matmul weight (K, E), bf16 for the MXU.
    w = conv_w.reshape(E, K).T.astype(jnp.bfloat16)

    # Positional embedding with the conv bias folded into the patch rows and
    # the cls token folded into row 0 (zero patch row * W == 0).
    pos_full = jnp.concatenate(
        [cls_token[0] + pos_embed[0, :1, :],                    # (1, E)  cls row
         pos_embed[0, 1:, :] + conv_b[None, :]],                # (N, E)  patch rows
        axis=0,
    ).astype(jnp.float32)                                       # (N+1, E)

    grid_spec = pltpu.PrefetchScalarGridSpec(
        num_scalar_prefetch=0,
        grid=(B,),
        in_specs=[
            pl.BlockSpec((None, N + 1, K), lambda b: (b, 0, 0)),  # per-batch patches
            pl.BlockSpec((K, E), lambda b: (0, 0)),               # weight (constant)
            pl.BlockSpec((N + 1, E), lambda b: (0, 0)),           # pos+bias (constant)
        ],
        out_specs=pl.BlockSpec((None, N + 1, E), lambda b: (b, 0, 0)),
    )

    out = pl.pallas_call(
        _patch_embed_kernel,
        out_shape=jax.ShapeDtypeStruct((B, N + 1, E), x.dtype),
        grid_spec=grid_spec,
        compiler_params=pltpu.CompilerParams(
            dimension_semantics=("parallel",),
            # Let XLA fuse the reshape/transpose/cast/pad producer of operand 0
            # into the kernel's input so `patches` isn't a separate HBM pass.
            allow_input_fusion=[True, False, False],
        ),
    )(patches, w, pos_full)

    # TODO(synk): nn.Dropout(0.1) is identity in eval mode; training-mode
    # stochastic dropout is not implemented here.
    return out


if __name__ == "__main__":
    # Small shapes consistent with the module: image 16x16, patch 4, C=3,
    # E=128 (multiple of 128 -> lane-dense output stores), N=16 patches.
    image_size = 16
    patch_size = 4
    in_channels = 3
    embed_dim = 128
    batch = 2
    num_patches = (image_size // patch_size) ** 2

    key = jax.random.PRNGKey(0)
    kx, kw, kb, kc, kp = jax.random.split(key, 5)

    x = jax.random.normal(kx, (batch, in_channels, image_size, image_size), jnp.float32)
    conv_w = 0.05 * jax.random.normal(
        kw, (embed_dim, in_channels, patch_size, patch_size), jnp.float32
    )
    conv_b = 0.05 * jax.random.normal(kb, (embed_dim,), jnp.float32)
    cls_token = 0.02 * jax.random.normal(kc, (1, 1, embed_dim), jnp.float32)
    pos_embed = 0.02 * jax.random.normal(kp, (1, num_patches + 1, embed_dim), jnp.float32)

    out = patch_embedding_forward(
        x, conv_w, conv_b, cls_token, pos_embed, patch_size=patch_size
    )
    out = jax.block_until_ready(out)

    assert out.shape == (batch, num_patches + 1, embed_dim), out.shape
    assert out.dtype == jnp.float32

    # Reference in plain f32 JAX (conv-as-matmul + cls + pos). The kernel uses a
    # bf16 MXU datapath with f32 accumulation, so the tolerance is loosened.
    Hp = image_size // patch_size
    patches_ref = (
        x.reshape(batch, in_channels, Hp, patch_size, Hp, patch_size)
        .transpose(0, 2, 4, 1, 3, 5)
        .reshape(batch, num_patches, -1)
    )
    proj_ref = patches_ref @ conv_w.reshape(embed_dim, -1).T + conv_b
    ref = jnp.concatenate(
        [jnp.broadcast_to(cls_token, (batch, 1, embed_dim)), proj_ref], axis=1
    ) + pos_embed
    max_err = float(jnp.max(jnp.abs(out - ref)))
    assert jnp.allclose(out, ref, atol=2e-2, rtol=2e-2), max_err

    print("KERNEL_OK")
</pallas_src>

<mosaic_0001>
module attributes {stable_mosaic.version = 11 : i64} {
  func.func @_patch_embed_kernel(%arg0: i32, %arg1: memref<1x17x48xbf16, #tpu.memory_space<vmem>>, %arg2: memref<48x128xbf16, #tpu.memory_space<vmem>>, %arg3: memref<17x128xf32, #tpu.memory_space<vmem>>, %arg4: memref<1x17x128xf32, #tpu.memory_space<vmem>>) attributes {dimension_semantics = [#tpu.dimension_semantics<parallel>], iteration_bounds = array<i64: 2>, scalar_prefetch = 0 : i64, scratch_operands = 0 : i64, tpu.core_type = #tpu.core_type<tc>, window_params = [{transform_indices = @transform_0, window_bounds = array<i64: 1, 17, 48>}, {pipeline_mode = #tpu.pipeline_mode<synchronous>, transform_indices = @transform_1, window_bounds = array<i64: 48, 128>}, {pipeline_mode = #tpu.pipeline_mode<synchronous>, transform_indices = @transform_2, window_bounds = array<i64: 17, 128>}, {transform_indices = @transform_3, window_bounds = array<i64: 1, 17, 128>}]} {
    %c0 = arith.constant 0 : index
    %c0_0 = arith.constant 0 : index
    %c0_1 = arith.constant 0 : index
    %0 = vector.load %arg1[%c0, %c0_0, %c0_1] : memref<1x17x48xbf16, #tpu.memory_space<vmem>>, vector<1x17x48xbf16>
    %1 = vector.shape_cast %0 : vector<1x17x48xbf16> to vector<17x48xbf16>
    %c0_2 = arith.constant 0 : index
    %c0_3 = arith.constant 0 : index
    %2 = vector.load %arg2[%c0_2, %c0_3] : memref<48x128xbf16, #tpu.memory_space<vmem>>, vector<48x128xbf16>
    %cst = arith.constant dense<0.000000e+00> : vector<17x128xf32>
    %3 = tpu.matmul %1, %2, %cst {dimension_numbers = #tpu.dot_dimension_numbers<[1], [0], [0], [1], [0, 0, 1, 1], [], []>} : vector<17x48xbf16>, vector<48x128xbf16>, vector<17x128xf32> -> vector<17x128xf32>
    %c0_4 = arith.constant 0 : index
    %c0_5 = arith.constant 0 : index
    %4 = vector.load %arg3[%c0_4, %c0_5] : memref<17x128xf32, #tpu.memory_space<vmem>>, vector<17x128xf32>
    %5 = arith.addf %3, %4 : vector<17x128xf32>
    %c0_6 = arith.constant 0 : index
    %c0_7 = arith.constant 0 : index
    %c0_8 = arith.constant 0 : index
    %6 = vector.load %arg4[%c0_6, %c0_7, %c0_8] : memref<1x17x128xf32, #tpu.memory_space<vmem>>, vector<1x17x128xf32>
    %7 = vector.shape_cast %6 : vector<1x17x128xf32> to vector<17x128xf32>
    %8 = vector.shape_cast %5 : vector<17x128xf32> to vector<1x17x128xf32>
    tpu.vector_store %arg4[%c0_6, %c0_7, %c0_8], %8 {strides = array<i32>} : memref<1x17x128xf32, #tpu.memory_space<vmem>>, vector<1x17x128xf32>,
    return
  }
  func.func @transform_0(%arg0: i32) -> (i32, i32, i32) {
    %c0_i32 = arith.constant 0 : i32
    %c0_i32_0 = arith.constant 0 : i32
    %c0_i32_1 = arith.constant 0 : i32
    return %arg0, %c0_i32, %c0_i32_0 : i32, i32, i32
  }
  func.func @transform_1(%arg0: i32) -> (i32, i32) {
    %c0_i32 = arith.constant 0 : i32
    %c0_i32_0 = arith.constant 0 : i32
    %c0_i32_1 = arith.constant 0 : i32
    return %c0_i32, %c0_i32_0 : i32, i32
  }
  func.func @transform_2(%arg0: i32) -> (i32, i32) {
    %c0_i32 = arith.constant 0 : i32
    %c0_i32_0 = arith.constant 0 : i32
    %c0_i32_1 = arith.constant 0 : i32
    return %c0_i32, %c0_i32_0 : i32, i32
  }
  func.func @transform_3(%arg0: i32) -> (i32, i32, i32) {
    %c0_i32 = arith.constant 0 : i32
    %c0_i32_0 = arith.constant 0 : i32
    %c0_i32_1 = arith.constant 0 : i32
    return %arg0, %c0_i32, %c0_i32_0 : i32, i32, i32
  }
}

</mosaic_0001>

<llo_original>
// kernel: patch_embedding_forward.2
$region0: #{patch_embedding_forward.2}
  #allocation0 [shape = 'u32[]', space=smem, size = 0x4, offset = 0x4, fixed_abs, tag = 'smem constant byte address 0x4 - core index']
  #allocation1 [shape = 'u32[144,128]{1,0:T(1,128)}', space=vmem, size = 0x12000, scoped, tag = 'internal scratch']
  #allocation2 [shape = 'u32[2048]{0}', space=vmem, size = 0x2000, scoped, tag = 'scoped memory for patch_embedding_forward.2']
  #allocation3 [shape = 'u32[2048]{0}', space=vmem, size = 0x2000, scoped, tag = 'scoped memory for patch_embedding_forward.2']
  #allocation4 [shape = 'u32[2048]{0}', space=vmem, size = 0x2000, scoped, tag = 'scoped memory for patch_embedding_forward.2']
  #allocation5 [shape = 'u32[2048]{0}', space=vmem, size = 0x2000, scoped, tag = 'scoped memory for patch_embedding_forward.2']
  #allocation6 [shape = 'u32[2048]{0}', space=vmem, size = 0x2000, scoped, tag = 'scoped memory for patch_embedding_forward.2']
  %s0 = inlined_call_operand.vmem [shape: bf16[48,128], index: 0, kind: input, shape index: {}]
  %s1 = inlined_call_operand.vmem [shape: f32[17,128], index: 1, kind: input, shape index: {}]
  %s2 = inlined_call_operand.vmem [shape: bf16[2,16,48], index: 2, kind: input, shape index: {}]
  %s3 = inlined_call_operand.<no memory space> [shape: bf16[], index: 3, kind: input, shape index: {}]
  %s4 = inlined_call_operand.vmem [shape: f32[2,17,128], index: 4, kind: output, shape index: {}]
  %s5 = sld [smem:[#allocation0]]
  $region45: #{patch_embedding_forward.2} parent=0
    _
  %s7 = ssub.s32 1, %s5
  %s8 = scalar_select 0, %s7, %s5
  %v9 = vstv %s3
  %v10 = vunpack.i.l.bf16 %v9
  %v12 = vunpack.i.h.bf16 %v9
  loop: start=0, step=1, limit=4
  $region2: #{patch_embedding_forward.2} parent=0 // loop_pre_header
    _
  $region3: #{patch_embedding_forward.2} parent=0 // loop_header
    %s15 = sphi 0, %s19
    %p16 = scmp.ge.s32.totalorder %s15, 4
    %s25 = sphi 0, %s27
    %s28 = sphi 0, %s25
    %s29 = sphi 0, %s28
    %s45 = sphi 0, %s29
    %s49 = sphi 0, %s49
    %s51 = sphi 0, %s49
    %s52 = sphi 0, %s51
    %s66 = sphi 0, %s52
    %s70 = sphi 0, %s70
    %s72 = sphi 0, %s70
    %s73 = sphi 0, %s72
    %s87 = sphi 0, %s73
    %s93 = sphi 0, %s95
    %s96 = sphi 0, %s93
    %s97 = sphi 0, %s96
    %s113 = sphi 0, %s97
  $region4: #{patch_embedding_forward.2} parent=0 // loop_header_branch
    %18 = sbr.rel (%p16) target = $region8
  $region5: #{patch_embedding_forward.2} parent=0 // loop_body
    %s20 = ssub.s32 %s15, 1
    %s21 = ssub.s32 %s15, 2
    %s22 = sadd.s32 %s15, 1
    %s23 = ssub.s32 %s15, %s22
    %p24 = scmp.eq.s32.totalorder %s23, 0
    %s26 = sadd.s32 %s25, 1
    %s27 = scalar_select %p24, %s25, %s26
    %p30 = pneg %p24
    %p31 = scmp.eq.s32.totalorder %s15, 1
    %p32 = por %p30, %p31
    %p33 = scmp.ne.s32.totalorder %s25, %s28
    %p34 = scmp.eq.s32.totalorder %s15, 0
    %p35 = por %p33, %p34
    %p36 = scmp.ne.s32.totalorder %s25, %s28
    %p37 = scmp.eq.s32.totalorder %s20, 1
    %p38 = por %p36, %p37
    %p39 = scmp.ne.s32.totalorder %s28, %s29
    %p40 = scmp.eq.s32.totalorder %s20, 0
    %p41 = por %p39, %p40
    %p42 = scmp.ne.s32.totalorder %s28, %s29
    %p43 = scmp.eq.s32.totalorder %s21, 1
    %p44 = por %p42, %p43
    %p46 = scmp.ne.s32.totalorder %s29, %s45
    %p47 = scmp.eq.s32.totalorder %s21, 0
    %p48 = por %p46, %p47
    %s50 = sadd.s32 %s49, 1
    %p53 = scmp.eq.s32.totalorder %s15, 1
    %p54 = scmp.ne.s32.totalorder %s49, %s51
    %p55 = scmp.eq.s32.totalorder %s15, 0
    %p56 = por %p54, %p55
    %p57 = scmp.ne.s32.totalorder %s49, %s51
    %p58 = scmp.eq.s32.totalorder %s20, 1
    %p59 = por %p57, %p58
    %p60 = scmp.ne.s32.totalorder %s51, %s52
    %p61 = scmp.eq.s32.totalorder %s20, 0
    %p62 = por %p60, %p61
    %p63 = scmp.ne.s32.totalorder %s51, %s52
    %p64 = scmp.eq.s32.totalorder %s21, 1
    %p65 = por %p63, %p64
    %p67 = scmp.ne.s32.totalorder %s52, %s66
    %p68 = scmp.eq.s32.totalorder %s21, 0
    %p69 = por %p67, %p68
    %s71 = sadd.s32 %s70, 1
    %p74 = scmp.eq.s32.totalorder %s15, 1
    %p75 = scmp.ne.s32.totalorder %s70, %s72
    %p76 = scmp.eq.s32.totalorder %s15, 0
    %p77 = por %p75, %p76
    %p78 = scmp.ne.s32.totalorder %s70, %s72
    %p79 = scmp.eq.s32.totalorder %s20, 1
    %p80 = por %p78, %p79
    %p81 = scmp.ne.s32.totalorder %s72, %s73
    %p82 = scmp.eq.s32.totalorder %s20, 0
    %p83 = por %p81, %p82
    %p84 = scmp.ne.s32.totalorder %s72, %s73
    %p85 = scmp.eq.s32.totalorder %s21, 1
    %p86 = por %p84, %p85
    %p88 = scmp.ne.s32.totalorder %s73, %s87
    %p89 = scmp.eq.s32.totalorder %s21, 0
    %p90 = por %p88, %p89
    %s91 = ssub.s32 %s15, %s22
    %p92 = scmp.eq.s32.totalorder %s91, 0
    %s94 = sadd.s32 %s93, 1
    %s95 = scalar_select %p92, %s93, %s94
    %p98 = pneg %p92
    %p99 = scmp.eq.s32.totalorder %s15, 1
    %p100 = por %p98, %p99
    %p101 = scmp.ne.s32.totalorder %s93, %s96
    %p102 = scmp.eq.s32.totalorder %s15, 0
    %p103 = por %p101, %p102
    %p104 = scmp.ne.s32.totalorder %s93, %s96
    %p105 = scmp.eq.s32.totalorder %s20, 1
    %p106 = por %p104, %p105
    %p107 = scmp.ne.s32.totalorder %s96, %s97
    %p108 = scmp.eq.s32.totalorder %s20, 0
    %p109 = por %p107, %p108
    %p110 = scmp.ne.s32.totalorder %s96, %s97
    %p111 = scmp.eq.s32.totalorder %s21, 1
    %p112 = por %p110, %p111
    %p114 = scmp.ne.s32.totalorder %s97, %s113
    %p115 = scmp.eq.s32.totalorder %s21, 0
    %p116 = por %p114, %p115
    %p117 = scmp.le.s32.totalorder 1, %s15
    %p118 = scmp.lt.s32.totalorder %s15, 3
    %p119 = pnand %p117, %p118
    %p120 = pneg %p119
    // Predicated region
    $region9: #{patch_embedding_forward.2} parent=5 // pred_check
      _
    $region10: #{patch_embedding_forward.2} parent=5 // pred_check_branch
      %122 = sbr.rel (%p119) target = $region12
    $region11: #{patch_embedding_forward.2} parent=5 // pred_region
      %s123 = ssub.s32 %s15, 1
      // Predicated region
      $region13: #{patch_embedding_forward.2} parent=11 // pred_check
        %p124 = pneg %p62
      $region14: #{patch_embedding_forward.2} parent=11 // pred_check_branch
        %126 = sbr.rel (%p124) target = $region16
      $region15: #{patch_embedding_forward.2} parent=11 // pred_region
        _
      $region16: #{patch_embedding_forward.2} parent=11 // pred_fallthru
        _
      // Predicated region
      $region17: #{patch_embedding_forward.2} parent=11 // pred_check
        %p127 = pneg %p83
      $region18: #{patch_embedding_forward.2} parent=11 // pred_check_branch
        %129 = sbr.rel (%p127) target = $region20
      $region19: #{patch_embedding_forward.2} parent=11 // pred_region
        _
      $region20: #{patch_embedding_forward.2} parent=11 // pred_fallthru
        _
    $region12: #{patch_embedding_forward.2} parent=5 // pred_fallthru
      _
    %p130 = scmp.lt.s32.totalorder %s15, 2
    // Predicated region
    $region21: #{patch_embedding_forward.2} parent=5 // pred_check
      %p131 = pneg %p130
    $region22: #{patch_embedding_forward.2} parent=5 // pred_check_branch
      %133 = sbr.rel (%p131) target = $region24
    $region23: #{patch_embedding_forward.2} parent=5 // pred_region
      // Predicated region
      $region25: #{patch_embedding_forward.2} parent=23 // pred_check
        %p134 = pneg %p35
      $region26: #{patch_embedding_forward.2} parent=23 // pred_check_branch
        %136 = sbr.rel (%p134) target = $region28
      $region27: #{patch_embedding_forward.2} parent=23 // pred_region
        %p137 = scmp.lt.s32.totalorder %s15, 1
        %s138 = scalar_select %p137, %s15, 1
        %s139 = smul.addr %s138, 2
        %s140 = sadd.s32 4294967295, %s139
        %s141 = smul.addr %s140, 4
        %s142 = scalar_lea.vmem %s2, %s141
      $region28: #{patch_embedding_forward.2} parent=23 // pred_fallthru
        _
    $region24: #{patch_embedding_forward.2} parent=5 // pred_fallthru
      _
    %p143 = scmp.le.s32.totalorder 1, %s15
    %p144 = scmp.lt.s32.totalorder %s15, 3
    %p145 = pnand %p143, %p144
    %p146 = pneg %p145
    // Predicated region
    $region29: #{patch_embedding_forward.2} parent=5 // pred_check
      _
    $region30: #{patch_embedding_forward.2} parent=5 // pred_check_branch
      %148 = sbr.rel (%p145) target = $region32
    $region31: #{patch_embedding_forward.2} parent=5 // pred_region
      #allocation7 [shape = 'u8[6144]{0}', space=vmem, size = 0x1800, dematerialized = true, scoped, tag = 'FusionAdapter Buffer %fusion.1 = bf16[2,17,48]{2,1,0:T(8,128)(2,1)} fusion(%param_2.3, %param_3), kind=kLoop, calls=%fused_computation.3.clone, metadata={op_name="jit(patch_embedding_forward)/jit(_pad)/pad" stack_frame_id=10}']
      %s149 = ssub.s32 %s15, 1
      %p150 = scmp.lt.s32.totalorder %s20, 1
      %s151 = scalar_select %p150, %s20, 1
      %s152 = smul.addr %s151, 2
      %s153 = sadd.s32 4294967295, %s152
      %s154 = smul.addr %s153, 4
      %s155 = scalar_lea.vmem %s2, %s154
      %p156 = pneg %p41
      %p157 = pneg %p38
      %p158 = pneg %p62
      %p159 = pneg %p59
      %p160 = pneg %p83
      %p161 = pneg %p80
      %p162 = pneg %p109
      %p163 = pneg %p106
      %p164 = scmp.lt.s32.totalorder %s20, 1
      %s165 = scalar_select %p164, %s20, 1
      %s166 = smul.addr %s165, 3
      %s167 = smul.addr %s166, 8
      %s168 = scalar_lea.vmem %s4, %s167
      %p169 = scmp.lt.s32.totalorder %s20, 1
      %s170 = scalar_select %p169, %s20, 1
      %s171 = smul.addr %s170, 2
      %s172 = sadd.s32 4294967295, %s171
      %s173 = smul.addr %s172, 4
      %s174 = scalar_lea.vmem %s2, %s173
      %p175 = scmp.lt.s32.totalorder %s20, 1
      %s176 = scalar_select %p175, %s20, 1
      %s177 = smul.addr %s176, 3
      %s178 = smul.addr %s177, 8
      %s179 = scalar_lea.vmem %s4, %s178
      %s181 = sand.u32 0, 85
      %s182 = sshrl.u32 %s181, 1
      %s183 = sor.u32 %s181, %s182
      %s184 = sand.u32 51, %s183
      %s185 = sshrl.u32 %s184, 2
      %s186 = sor.u32 %s184, %s185
      %s187 = sand.u32 15, %s186
      %v188 = vld [vmem:[%s174] sm:%s187]
      %v189 = vunpack.c.l.bf16 %v188
      %v190 = vunpack.c.h.bf16 %v188
      %s191 = scalar_lea.vmem %s174, 4
      %v192 = vld [vmem:[%s191] sm:$0xf]
      %v193 = vunpack.c.l.bf16 %v192
      %v194 = vunpack.c.h.bf16 %v192
      %v195 = vlaneseq
      %v196 = vand.u32 %v195, 127
      %vm198 = vcmp.lt.s32.totalorder %v196, 48
      %v199 = vsel %vm198, %v193, %v10
      %vm200 = vcmask 1046528
      %v201 = vsel %vm200, %v199, %v10
      %v202 = vrot.slane %v201, 7
      %v203 = vpack.c.bf16 0.0, %v202
      %205 = vst [vmem:[#allocation7] sm:$0xf] %v203
      %s206 = scalar_lea.vmem %s174, 8
      %v207 = vld [vmem:[%s206] sm:$0xf]
      %v208 = vunpack.c.l.bf16 %v207
      %v209 = vunpack.c.h.bf16 %v207
      %v210 = vlaneseq
      %v211 = vand.u32 %v210, 127
      %vm213 = vcmp.lt.s32.totalorder %v211, 48
      %v214 = vsel %vm213, %v208, %v10
      %vm215 = vcmask 1046528
      %v216 = vsel %vm215, %v214, %v199
      %v217 = vrot.slane %v216, 7
      %s218 = scalar_lea.vmem [#allocation7], 4
      %v219 = vpack.c.bf16 0.0, %v217
      %221 = vst [vmem:[%s218] sm:$0xf] %v219
      %vm222 = vcmask 1046528
      %v223 = vsel %vm222, %v10, %v214
      %v224 = vrot.slane %v223, 7
      %s225 = scalar_lea.vmem [#allocation7], 8
      %v226 = vpack.c.bf16 0.0, %v224
      %228 = vst [vmem:[%s225] sm:$0xf] %v226
      %v230 = vld [vmem:[#allocation7] sm:$0xf]
      %v231 = vld [vmem:[#allocation7 + $0x4] sm:$0xf]
      %v232 = vld [vmem:[#allocation7 + $0x8] sm:$0x1]
      %v233 = vld [vmem:[%s0] sm:$0xf]
      %v234 = vld [vmem:[%s0 + $0x4] sm:$0xf]
      %v235 = vld [vmem:[%s0 + $0x8] sm:$0xf]
      %v236 = vld [vmem:[%s0 + $0xc] sm:$0xf]
      %v237 = vld [vmem:[%s0 + $0x10] sm:$0xf]
      %v238 = vld [vmem:[%s0 + $0x14] sm:$0xf]
      %v239 = vld [vmem:[%s1] sm:$0xff]
      %v240 = vld [vmem:[%s1 + $0x8] sm:$0xff]
      %v241 = vld [vmem:[%s1 + $0x10] sm:$0x1]
      %v245 = vunpack.c.l.b16 %v230
      %v246 = vunpack.c.l.b16 %v231
      %v247 = vunpack.c.l.b16 %v232
      %v248 = vpack.c.b16 %v246, %v245
      %v249 = vpack.c.b16 %v247, %v247
      %v256 = vunpack.c.l.b16 %v233
      %v257 = vunpack.c.l.b16 %v234
      %v258 = vunpack.c.l.b16 %v235
      %v259 = vunpack.c.l.b16 %v236
      %v260 = vunpack.c.l.b16 %v237
      %v261 = vunpack.c.l.b16 %v238
      %v262 = vpack.c.b16 %v257, %v256
      %v263 = vpack.c.b16 %v259, %v258
      %v264 = vpack.c.b16 %v261, %v260
      %vm268 = vcmask 392192
      %v270 = vsel %vm268, %v248, 0
      %v273 = vsel %vm268, %v249, 0
      %275 = vmatprep.subr.bf16.mxu0 0
      %276 = vmatpush1.bf16.msra.mxu0 %v262
      %277 = vmatprep.subr.bf16.mxu0 0
      %278 = vmatpush1.bf16.msra.mxu0 %v263
      %279 = vmatprep.subr.bf16.mxu0 0
      %280 = vmatpush1.bf16.msra.mxu0 %v264
      %281 = vmatprep.subr.bf16.mxu0 0
      %282 = vmatpush1.bf16.msra.mxu0 0
      %283 = vmatprep.subr.bf16.mxu0 0
      %284 = vmatpush1.bf16.msra.mxu0 0
      %285 = vmatprep.subr.bf16.mxu0 0
      %286 = vmatpush1.bf16.msra.mxu0 0
      %287 = vmatprep.subr.bf16.mxu0 0
      %288 = vmatpush1.bf16.msra.mxu0 0
      %289 = vmatprep.subr.bf16.mxu0 0
      %290 = vmatpush1.bf16.msra.mxu0 0
      %291 = vmatprep.subr.bf16.mxu0 0
      %292 = vmatpush1.bf16.msra.mxu0 0
      %293 = vmatprep.subr.bf16.mxu0 0
      %294 = vmatpush1.bf16.msra.mxu0 0
      %295 = vmatprep.subr.bf16.mxu0 0
      %296 = vmatpush1.bf16.msra.mxu0 0
      %297 = vmatprep.subr.bf16.mxu0 0
      %298 = vmatpush1.bf16.msra.mxu0 0
      %299 = vmatprep.subr.bf16.mxu0 0
      %300 = vmatpush1.bf16.msra.mxu0 0
      %301 = vmatprep.subr.bf16.mxu0 0
      %302 = vmatpush1.bf16.msra.mxu0 0
      %303 = vmatprep.subr.bf16.mxu0 0
      %304 = vmatpush1.bf16.msra.mxu0 0
      %305 = vmatprep.subr.bf16.mxu0 0
      %306 = vmatpush1.bf16.msra.mxu0 0
      %307 = vmatprep.mubr.bf16.mxu0 0
      %308 = vmatmul.mubr.bf16.gmra.mrb[0].mxu0 %v270
      %v309 = vpop.f32.mrb[0].mxu0
      %v310 = vadd.f32 %v239, %v309
      %v311 = vpop.f32.mrb[0].mxu0
      %v312 = vpop.f32.mrb[0].mxu0
      %v313 = vadd.f32 %v240, %v312
      %v314 = vpop.f32.mrb[0].mxu0
      %315 = vmatprep.mubr.bf16.mxu0 0
      %316 = vmatmul.mubr.bf16.gmra.mrb[0].mxu0 %v273
      %v317 = vpop.f32.mrb[0].mxu0
      %v318 = vadd.f32 %v241, %v317
      %v319 = vpop.f32.mrb[0].mxu0
      %v320 = vpop.f32.mrb[0].mxu0
      %v321 = vpop.f32.mrb[0].mxu0
      %322 = vdwg.mxu0
      %323 = vst [vmem:[%s179] sm:$0xff] %v310
      %324 = vst [vmem:[%s179 + $0x8] sm:$0xff] %v313
      %325 = vst [vmem:[%s179 + $0x10] sm:$0x1] %v318
      %p326 = scmp.lt.s32.totalorder %s20, 1
      %s327 = scalar_select %p326, %s20, 1
      %s328 = smul.addr %s327, 3
      %s329 = smul.addr %s328, 8
      %s330 = scalar_lea.vmem %s4, %s329
      // Predicated region
      $region33: #{patch_embedding_forward.2} parent=31 // pred_check
        %p331 = pneg %p106
      $region34: #{patch_embedding_forward.2} parent=31 // pred_check_branch
        %333 = sbr.rel (%p331) target = $region36
      $region35: #{patch_embedding_forward.2} parent=31 // pred_region
        _
      $region36: #{patch_embedding_forward.2} parent=31 // pred_fallthru
        _
    $region32: #{patch_embedding_forward.2} parent=5 // pred_fallthru
      _
    %p334 = scmp.le.s32.totalorder 2, %s15
    // Predicated region
    $region37: #{patch_embedding_forward.2} parent=5 // pred_check
      %p335 = pneg %p334
    $region38: #{patch_embedding_forward.2} parent=5 // pred_check_branch
      %337 = sbr.rel (%p335) target = $region40
    $region39: #{patch_embedding_forward.2} parent=5 // pred_region
      %s338 = ssub.s32 %s15, 2
      // Predicated region
      $region41: #{patch_embedding_forward.2} parent=39 // pred_check
        %p339 = pneg %p112
      $region42: #{patch_embedding_forward.2} parent=39 // pred_check_branch
        %341 = sbr.rel (%p339) target = $region44
      $region43: #{patch_embedding_forward.2} parent=39 // pred_region
        %p342 = scmp.lt.s32.totalorder %s21, 1
        %s343 = scalar_select %p342, %s21, 1
        %s344 = smul.addr %s343, 3
        %s345 = smul.addr %s344, 8
        %s346 = scalar_lea.vmem %s4, %s345
      $region44: #{patch_embedding_forward.2} parent=39 // pred_fallthru
        _
    $region40: #{patch_embedding_forward.2} parent=5 // pred_fallthru
      _
  $region6: #{patch_embedding_forward.2} parent=0 // loop_footer
    %s19 = sadd.s32 1, %s15
  $region7: #{patch_embedding_forward.2} parent=0 // loop_footer_branch
    %14 = sbr.rel target = $region3
  $region8: #{patch_embedding_forward.2} parent=0 // loop_exit
    _

</llo_original>
